<compile_context>
chip_gen: v6e
topology: v6e:2x2x1
jax: 0.10.0
libtpu: 0.0.40
codegen_flags: <defaults>
</compile_context>

<pallas_src>
import jax
import jax.numpy as jnp
from jax.experimental import pallas as pl
from jax.experimental.pallas import tpu as pltpu

_LANE = 128
_PALLAS_MIN_BYTES = 512 * 1024          # below this: plain (fusable) jnp multiply
_TARGET_BLOCK_BYTES = 2 * 1024 * 1024   # ~2 MiB per buffer; v5e/v6e/v7x safe


# ---------------------------------------------------------------------------
# Pallas kernel: backward of the gradient-reversal layer, dx = lambda_ * grads
# ---------------------------------------------------------------------------
def _scale_kernel(lam_ref, g_ref, o_ref):
    # lambda_ lives in SMEM; multiply in the gradient's native dtype
    # (matches grads.new_tensor(lambda_) * grads in the PyTorch reference).
    o_ref[...] = lam_ref[0].astype(o_ref.dtype) * g_ref[...]


# ---------------------------------------------------------------------------
# Layout / launch helpers (no padding, no identity copies)
# ---------------------------------------------------------------------------
def _as_2d(x):
    """Flatten to a lane-dense 2-D slab for the elementwise scale.  Element
    order is preserved (row-major reshape), so the result reshapes straight
    back to the original shape with no slicing."""
    n = x.size
    for w in (2048, 1024, 512, 256, 128):
        if n % w == 0:
            return x.reshape(n // w, w)
    if x.ndim >= 2:
        # Ragged total size: keep the natural 2-D shape; the boundary block of
        # the grid is masked by Pallas (no jnp.pad round-trip).
        return x.reshape(-1, x.shape[-1])
    return x.reshape(1, n)


def _pallas_scale(grads, lam):
    """Backward scale on a large tensor via a tiled, pipelined Pallas kernel."""
    slab = _as_2d(grads)
    R, C = slab.shape
    itemsize = slab.dtype.itemsize
    lam_arr = lam.astype(jnp.float32).reshape(1)

    # --- pick a lane-dense ~2 MiB block ---------------------------------
    row_bytes = C * itemsize
    if 8 * row_bytes > _TARGET_BLOCK_BYTES:
        # Extremely wide rows: tile the lane dimension too.
        block_cols = max(_LANE,
                         (_TARGET_BLOCK_BYTES // (8 * itemsize)) // _LANE * _LANE)
        block_rows = 8
    else:
        block_cols = C
        block_rows = max(8, (_TARGET_BLOCK_BYTES // row_bytes) // 8 * 8)
        if block_rows >= R:
            if R > 8:
                # Keep >=2 grid steps so the parallel grid can split across
                # both TensorCores on v7x.
                block_rows = (((R + 1) // 2 + 7) // 8) * 8
            else:
                block_rows = R  # full-extent single block (tiny fallback)

    grid = (pl.cdiv(R, block_rows), pl.cdiv(C, block_cols))

    out = pl.pallas_call(
        _scale_kernel,
        out_shape=jax.ShapeDtypeStruct((R, C), slab.dtype),
        grid_spec=pl.GridSpec(
            grid=grid,
            in_specs=[
                pl.BlockSpec(memory_space=pltpu.SMEM),  # lambda_ scalar
                pl.BlockSpec((block_rows, block_cols), lambda i, j: (i, j)),
            ],
            out_specs=pl.BlockSpec((block_rows, block_cols),
                                   lambda i, j: (i, j)),
        ),
        compiler_params=pltpu.CompilerParams(
            dimension_semantics=("parallel", "parallel")),
    )(lam_arr, slab)
    return out.reshape(grads.shape)


def _scale_grads(grads, lam):
    nbytes = grads.size * grads.dtype.itemsize
    if nbytes < _PALLAS_MIN_BYTES:
        # Tiny (the real Global_T case: a (1,) parameter): a plain multiply
        # fuses into the surrounding train-step fusion -- no kernel launch.
        return lam.astype(grads.dtype) * grads
    return _pallas_scale(grads, lam)


# ---------------------------------------------------------------------------
# Gradient-reversal layer.  lambda_ is a traced f32 scalar (zero cotangent),
# mirroring PyTorch's `return (dx, None)` without forcing retraces.
# ---------------------------------------------------------------------------
@jax.custom_vjp
def _grl_core(x, lambda_):
    return x  # identity forward; no copy kernel needed in JAX


def _grl_fwd(x, lambda_):
    return x, lambda_


def _grl_bwd(lambda_, grads):
    # dx = +lambda_ * grads (no negation in this reference implementation)
    return _scale_grads(grads, lambda_), jnp.zeros_like(lambda_)


_grl_core.defvjp(_grl_fwd, _grl_bwd)


def gradient_reversal(x, lambda_):
    lam = jnp.asarray(lambda_, dtype=jnp.float32).reshape(())
    return _grl_core(x, lam)


# ---------------------------------------------------------------------------
# Module ports
# ---------------------------------------------------------------------------
def global_t_apply(global_T, fake_input1, fake_input2, lambda_):
    """Functional Global_T.forward: fake inputs are ignored (as in PyTorch)."""
    del fake_input1, fake_input2
    return gradient_reversal(global_T, lambda_)


class Global_T:
    """JAX/Pallas port of the PyTorch Global_T module."""

    def __init__(self):
        # nn.Parameter(torch.ones(1), requires_grad=True)
        self.global_T = jnp.ones((1,), dtype=jnp.float32)

    def __call__(self, fake_input1, fake_input2, lambda_):
        return global_t_apply(self.global_T, fake_input1, fake_input2, lambda_)


if __name__ == "__main__":
    key = jax.random.PRNGKey(0)
    k1, k2, k3 = jax.random.split(key, 3)
    fake1 = jax.random.normal(k1, (2, 4, 16, 16), dtype=jnp.float32)
    fake2 = jax.random.normal(k2, (2, 4, 16, 16), dtype=jnp.float32)
    lambda_ = 0.5

    mod = Global_T()

    # Forward: returns the (1,) temperature parameter unchanged (identity).
    y = mod(fake1, fake2, lambda_)
    jax.block_until_ready(y)
    assert y.shape == (1,) and y.dtype == jnp.float32
    assert jnp.allclose(y, mod.global_T)

    # Backward through the real path (tiny -> fused jnp, no Pallas launch):
    # d/dT sum(2 * GRL(T)) == 2 * lambda_   (dx = +lambda_ * grads).
    dT = jax.grad(
        lambda p: jnp.sum(global_t_apply(p, fake1, fake2, lambda_) * 2.0)
    )(mod.global_T)
    jax.block_until_ready(dT)
    assert jnp.allclose(dT, 2.0 * lambda_ * jnp.ones_like(mod.global_T))

    # Exercise the Pallas backward-scale kernel once (tiled grid path with a
    # masked boundary block and 2 parallel grid steps) and verify it.
    g = jax.random.normal(k3, (96, 384), dtype=jnp.float32)
    dx = _pallas_scale(g, jnp.asarray(0.25, dtype=jnp.float32))
    jax.block_until_ready(dx)
    assert dx.shape == g.shape
    assert jnp.allclose(dx, 0.25 * g, rtol=1e-6, atol=1e-6)

    print("KERNEL_OK")
</pallas_src>

<mosaic_0001>
module attributes {stable_mosaic.version = 11 : i64} {
  func.func @_scale_kernel(%arg0: i32, %arg1: i32, %arg2: memref<1xf32, #tpu.memory_space<smem>>, %arg3: memref<16x2048xf32, #tpu.memory_space<vmem>>, %arg4: memref<16x2048xf32, #tpu.memory_space<vmem>>) attributes {dimension_semantics = [#tpu.dimension_semantics<parallel>, #tpu.dimension_semantics<parallel>], iteration_bounds = array<i64: 2, 1>, scalar_prefetch = 0 : i64, scratch_operands = 0 : i64, tpu.core_type = #tpu.core_type<tc>, window_params = [{transform_indices = @transform_0, window_bounds = array<i64: 1>}, {transform_indices = @transform_1, window_bounds = array<i64: 16, 2048>}, {transform_indices = @transform_2, window_bounds = array<i64: 16, 2048>}]} {
    %c0 = arith.constant 0 : index
    %0 = memref.load %arg2[%c0] : memref<1xf32, #tpu.memory_space<smem>>
    %c0_0 = arith.constant 0 : index
    %c0_1 = arith.constant 0 : index
    %1 = vector.load %arg3[%c0_0, %c0_1] : memref<16x2048xf32, #tpu.memory_space<vmem>>, vector<16x2048xf32>
    %2 = vector.broadcast %0 : f32 to vector<16x2048xf32>
    %3 = arith.mulf %2, %1 : vector<16x2048xf32>
    %c0_2 = arith.constant 0 : index
    %c0_3 = arith.constant 0 : index
    %4 = vector.load %arg4[%c0_2, %c0_3] : memref<16x2048xf32, #tpu.memory_space<vmem>>, vector<16x2048xf32>
    tpu.vector_store %arg4[%c0_2, %c0_3], %3 {strides = array<i32>} : memref<16x2048xf32, #tpu.memory_space<vmem>>, vector<16x2048xf32>,
    return
  }
  func.func @transform_0(%arg0: i32, %arg1: i32) -> i32 {
    %c0_i32 = arith.constant 0 : i32
    %c0_i32_0 = arith.constant 0 : i32
    return %c0_i32 : i32
  }
  func.func @transform_1(%arg0: i32, %arg1: i32) -> (i32, i32) {
    %c0_i32 = arith.constant 0 : i32
    return %arg0, %arg1 : i32, i32
  }
  func.func @transform_2(%arg0: i32, %arg1: i32) -> (i32, i32) {
    %c0_i32 = arith.constant 0 : i32
    return %arg0, %arg1 : i32, i32
  }
}

</mosaic_0001>

<llo_original>
// kernel: tpu_custom_call.1
$region0: #{tpu_custom_call.1}
  #allocation0 [shape = 'u32[]', space=smem, size = 0x4, offset = 0x4, fixed_abs, tag = 'smem constant byte address 0x4 - core index']
  #allocation1 [shape = 'u32[144,128]{1,0:T(1,128)}', space=vmem, size = 0x12000, scoped, tag = 'internal scratch']
  #allocation2 [shape = 'f32[1]{0:T(128)S(6)}', space=smem, size = 0x200, scoped, tag = 'scoped memory for tpu_custom_call.1']
  %s0 = inlined_call_operand.<no memory space> [shape: f32[1], index: 0, kind: input, shape index: {}]
  %s1 = inlined_call_operand.hbm [shape: f32[18,2048], index: 1, kind: input, shape index: {}]
  %s2 = inlined_call_operand.hbm [shape: f32[18,2048], index: 2, kind: output, shape index: {}]
  %s3 = sld [smem:[#allocation0]]
  $region45: #{tpu_custom_call.1} parent=0
    _
  %s5 = ssub.s32 1, %s3
  %s6 = scalar_select 0, %s5, %s3
  %7 = sst [smem:[#allocation2]] %s0
  $region1: #{tpu_custom_call.1} parent=0
    #allocation3 [shape = 'u8[262144]{0}', space=vmem, size = 0x40000, scoped, tag = 'input window, operand 1']
    #allocation4 [shape = 's32[2]{0}', space=sflag, size = 0x8, scoped, tag = 'scoped memory for tpu_custom_call.1']
    #allocation5 [shape = 's32[2]{0}', space=sflag, size = 0x8, scoped, tag = 'scoped memory for tpu_custom_call.1']
    #allocation6 [shape = 'u8[262144]{0}', space=vmem, size = 0x40000, scoped, tag = 'output window, operand 0']
    %8 = vsyncpa [#allocation4], 0
    %s9 = scalar_lea.sflag [#allocation4], 1
    %10 = vsyncpa %s9, 0
    %11 = vsyncpa [#allocation5], 0
    %s12 = scalar_lea.sflag [#allocation5], 1
    %13 = vsyncpa %s12, 0
    loop: start=0, step=1, limit=4
    $region2: #{tpu_custom_call.1} parent=1 // loop_pre_header
      _
    $region3: #{tpu_custom_call.1} parent=1 // loop_header
      %s15 = sphi 0, %s19
      %p16 = scmp.ge.s32.totalorder %s15, 4
      %s22 = sphi 0, %s34
      %s23 = sphi 0, %s30
      %s24 = sphi 0, %s22
      %s25 = sphi 0, %s23
      %s26 = sphi 0, %s24
      %s27 = sphi 0, %s25
      %s35 = sphi 0, %s35
      %s37 = sphi 0, %s35
      %s38 = sphi 0, %s37
      %s52 = sphi 0, %s38
      %s60 = sphi 0, %s62
      %s63 = sphi 0, %s60
      %s64 = sphi 0, %s63
      %s80 = sphi 0, %s64
      %s88 = sphi 0, %s90
      %s91 = sphi 0, %s88
      %s92 = sphi 0, %s91
      %s108 = sphi 0, %s92
    $region4: #{tpu_custom_call.1} parent=1 // loop_header_branch
      %18 = sbr.rel (%p16) target = $region8
    $region5: #{tpu_custom_call.1} parent=1 // loop_body
      %s20 = ssub.s32 %s15, 1
      %s21 = ssub.s32 %s15, 2
      %s28 = sadd.s32 1, %s23
      %p29 = scmp.ge.s32.totalorder %s28, 1
      %s30 = scalar_select %p29, 0, %s28
      %s31 = sadd.s32 1, %s22
      %s32 = scalar_select %p29, %s31, %s22
      %p33 = scmp.ge.s32.totalorder %s32, 2
      %s34 = scalar_select %p33, 0, %s32
      %s36 = sadd.s32 %s35, 1
      %p39 = scmp.eq.s32.totalorder %s15, 1
      %p40 = scmp.ne.s32.totalorder %s35, %s37
      %p41 = scmp.eq.s32.totalorder %s15, 0
      %p42 = por %p40, %p41
      %p43 = scmp.ne.s32.totalorder %s35, %s37
      %p44 = scmp.eq.s32.totalorder %s20, 1
      %p45 = por %p43, %p44
      %p46 = scmp.ne.s32.totalorder %s37, %s38
      %p47 = scmp.eq.s32.totalorder %s20, 0
      %p48 = por %p46, %p47
      %p49 = scmp.ne.s32.totalorder %s37, %s38
      %p50 = scmp.eq.s32.totalorder %s21, 1
      %p51 = por %p49, %p50
      %p53 = scmp.ne.s32.totalorder %s38, %s52
      %p54 = scmp.eq.s32.totalorder %s21, 0
      %p55 = por %p53, %p54
      %s56 = ssub.s32 %s22, %s34
      %s57 = ssub.s32 %s23, %s30
      %s58 = sor.u32 %s56, %s57
      %p59 = scmp.eq.s32.totalorder %s58, 0
      %s61 = sadd.s32 %s60, 1
      %s62 = scalar_select %p59, %s60, %s61
      %p65 = pneg %p59
      %p66 = scmp.eq.s32.totalorder %s15, 1
      %p67 = por %p65, %p66
      %p68 = scmp.ne.s32.totalorder %s60, %s63
      %p69 = scmp.eq.s32.totalorder %s15, 0
      %p70 = por %p68, %p69
      %p71 = scmp.ne.s32.totalorder %s60, %s63
      %p72 = scmp.eq.s32.totalorder %s20, 1
      %p73 = por %p71, %p72
      %p74 = scmp.ne.s32.totalorder %s63, %s64
      %p75 = scmp.eq.s32.totalorder %s20, 0
      %p76 = por %p74, %p75
      %p77 = scmp.ne.s32.totalorder %s63, %s64
      %p78 = scmp.eq.s32.totalorder %s21, 1
      %p79 = por %p77, %p78
      %p81 = scmp.ne.s32.totalorder %s64, %s80
      %p82 = scmp.eq.s32.totalorder %s21, 0
      %p83 = por %p81, %p82
      %s84 = ssub.s32 %s22, %s34
      %s85 = ssub.s32 %s23, %s30
      %s86 = sor.u32 %s84, %s85
      %p87 = scmp.eq.s32.totalorder %s86, 0
      %s89 = sadd.s32 %s88, 1
      %s90 = scalar_select %p87, %s88, %s89
      %p93 = pneg %p87
      %p94 = scmp.eq.s32.totalorder %s15, 1
      %p95 = por %p93, %p94
      %p96 = scmp.ne.s32.totalorder %s88, %s91
      %p97 = scmp.eq.s32.totalorder %s15, 0
      %p98 = por %p96, %p97
      %p99 = scmp.ne.s32.totalorder %s88, %s91
      %p100 = scmp.eq.s32.totalorder %s20, 1
      %p101 = por %p99, %p100
      %p102 = scmp.ne.s32.totalorder %s91, %s92
      %p103 = scmp.eq.s32.totalorder %s20, 0
      %p104 = por %p102, %p103
      %p105 = scmp.ne.s32.totalorder %s91, %s92
      %p106 = scmp.eq.s32.totalorder %s21, 1
      %p107 = por %p105, %p106
      %p109 = scmp.ne.s32.totalorder %s92, %s108
      %p110 = scmp.eq.s32.totalorder %s21, 0
      %p111 = por %p109, %p110
      %p112 = scmp.le.s32.totalorder 1, %s15
      %p113 = scmp.lt.s32.totalorder %s15, 3
      %p114 = pnand %p112, %p113
      %p115 = pneg %p114
      // Predicated region
      $region9: #{tpu_custom_call.1} parent=5 // pred_check
        _
      $region10: #{tpu_custom_call.1} parent=5 // pred_check_branch
        %117 = sbr.rel (%p114) target = $region12
      $region11: #{tpu_custom_call.1} parent=5 // pred_region
        %s118 = ssub.s32 %s15, 1
        // Predicated region
        $region13: #{tpu_custom_call.1} parent=11 // pred_check
          %p119 = pneg %p48
        $region14: #{tpu_custom_call.1} parent=11 // pred_check_branch
          %121 = sbr.rel (%p119) target = $region16
        $region15: #{tpu_custom_call.1} parent=11 // pred_region
          _
        $region16: #{tpu_custom_call.1} parent=11 // pred_fallthru
          _
      $region12: #{tpu_custom_call.1} parent=5 // pred_fallthru
        _
      %p122 = scmp.lt.s32.totalorder %s15, 2
      // Predicated region
      $region17: #{tpu_custom_call.1} parent=5 // pred_check
        %p123 = pneg %p122
      $region18: #{tpu_custom_call.1} parent=5 // pred_check_branch
        %125 = sbr.rel (%p123) target = $region20
      $region19: #{tpu_custom_call.1} parent=5 // pred_region
        // Predicated region
        $region21: #{tpu_custom_call.1} parent=19 // pred_check
          %p126 = pneg %p70
        $region22: #{tpu_custom_call.1} parent=19 // pred_check_branch
          %128 = sbr.rel (%p126) target = $region24
        $region23: #{tpu_custom_call.1} parent=19 // pred_region
          %s129 = sand.u32 %s60, 1
          %s130 = scalar_lea.sflag [#allocation4], %s129
          %s131 = sand.u32 %s60, 1
          %s132 = smul.addr %s131, 256
          %s133 = scalar_lea.vmem [#allocation3], %s132
          %s134 = smul.u32 2, %s22
          %s135 = smul.u32 16, %s23
          %s136 = ssub.s32 3, %s134
          %p137 = scmp.lt.s32.totalorder %s136, 2
          %s138 = scalar_select %p137, %s136, 2
          %s139 = smul.u32 128, %s138
          %s140 = smul.u32 %s139, 16
          %s142 = ssub.s32 4096, %s140
          %143 = vsyncadd %s130, %s142
          %p144 = scmp.ne.s32.totalorder 0, %s140
          %s145 = smul.addr %s134, 16
          %s146 = sadd.s32 %s135, %s145
          %s147 = smul.addr %s146, 128
          %s148 = scalar_lea.hbm %s1, %s147
          %s149 = smul.u32 128, %s138
          %s150 = sshll.u32 %s133, 4
          %s151 = int_to_ptr.vmem [resolvable:$true] %s150
          %s152 = sshll.u32 %s149, 4
          %156 = dma.hbm_to_vmem [thread:$0]  (%p144), %s148, %s152, %s151, %s130, 2048, 2048, 128
        $region24: #{tpu_custom_call.1} parent=19 // pred_fallthru
          _
      $region20: #{tpu_custom_call.1} parent=5 // pred_fallthru
        _
      %p157 = scmp.le.s32.totalorder 1, %s15
      %p158 = scmp.lt.s32.totalorder %s15, 3
      %p159 = pnand %p157, %p158
      %p160 = pneg %p159
      // Predicated region
      $region25: #{tpu_custom_call.1} parent=5 // pred_check
        _
      $region26: #{tpu_custom_call.1} parent=5 // pred_check_branch
        %162 = sbr.rel (%p159) target = $region28
      $region27: #{tpu_custom_call.1} parent=5 // pred_region
        %s163 = ssub.s32 %s15, 1
        %s164 = sand.u32 %s63, 1
        %s165 = scalar_lea.sflag [#allocation4], %s164
        %s166 = sand.u32 %s63, 1
        %s167 = smul.addr %s166, 256
        %s168 = scalar_lea.vmem [#allocation3], %s167
        // Predicated region
        $region29: #{tpu_custom_call.1} parent=27 // pred_check
          %p169 = pneg %p76
        $region30: #{tpu_custom_call.1} parent=27 // pred_check_branch
          %171 = sbr.rel (%p169) target = $region32
        $region31: #{tpu_custom_call.1} parent=27 // pred_region
          %172 = dma.done %s165, 4096
        $region32: #{tpu_custom_call.1} parent=27 // pred_fallthru
          _
        %p173 = pneg %p48
        %p174 = pneg %p45
        %s175 = sand.u32 %s63, 1
        %s176 = scalar_lea.sflag [#allocation4], %s175
        %s177 = sand.u32 %s63, 1
        %s178 = smul.addr %s177, 256
        %s179 = scalar_lea.vmem [#allocation3], %s178
        %p180 = pneg %p76
        %p181 = pneg %p73
        %p182 = pneg %p104
        %p183 = pneg %p101
        %s184 = sand.u32 %s91, 1
        %s185 = scalar_lea.sflag [#allocation5], %s184
        %s186 = sand.u32 %s91, 1
        %s187 = smul.addr %s186, 256
        %s188 = scalar_lea.vmem [#allocation6], %s187
        %s189 = smul.u32 2, %s24
        %s190 = smul.u32 16, %s25
        %s191 = ssub.s32 3, %s189
        %p192 = scmp.lt.s32.totalorder %s191, 2
        %s193 = scalar_select %p192, %s191, 2
        %s194 = smul.u32 128, %s193
        %s195 = smul.u32 %s194, 16
        %s196 = smul.u32 2, %s24
        %s197 = smul.u32 16, %s25
        %s198 = ssub.s32 3, %s196
        %p199 = scmp.lt.s32.totalorder %s198, 2
        %s200 = scalar_select %p199, %s198, 2
        %s201 = smul.u32 128, %s200
        %s202 = smul.u32 %s201, 16
        %s203 = sld [smem:[#allocation2]]
        %v204 = vld [vmem:[%s168] sm:$0xff]
        %v205 = vld [vmem:[%s168 + $0x8] sm:$0xff]
        %v206 = vld [vmem:[%s168 + $0x10] sm:$0xff]
        %v207 = vld [vmem:[%s168 + $0x18] sm:$0xff]
        %v208 = vld [vmem:[%s168 + $0x20] sm:$0xff]
        %v209 = vld [vmem:[%s168 + $0x28] sm:$0xff]
        %v210 = vld [vmem:[%s168 + $0x30] sm:$0xff]
        %v211 = vld [vmem:[%s168 + $0x38] sm:$0xff]
        %v212 = vld [vmem:[%s168 + $0x40] sm:$0xff]
        %v213 = vld [vmem:[%s168 + $0x48] sm:$0xff]
        %v214 = vld [vmem:[%s168 + $0x50] sm:$0xff]
        %v215 = vld [vmem:[%s168 + $0x58] sm:$0xff]
        %v216 = vld [vmem:[%s168 + $0x60] sm:$0xff]
        %v217 = vld [vmem:[%s168 + $0x68] sm:$0xff]
        %v218 = vld [vmem:[%s168 + $0x70] sm:$0xff]
        %v219 = vld [vmem:[%s168 + $0x78] sm:$0xff]
        %v220 = vld [vmem:[%s168 + $0x80] sm:$0xff]
        %v221 = vld [vmem:[%s168 + $0x88] sm:$0xff]
        %v222 = vld [vmem:[%s168 + $0x90] sm:$0xff]
        %v223 = vld [vmem:[%s168 + $0x98] sm:$0xff]
        %v224 = vld [vmem:[%s168 + $0xa0] sm:$0xff]
        %v225 = vld [vmem:[%s168 + $0xa8] sm:$0xff]
        %v226 = vld [vmem:[%s168 + $0xb0] sm:$0xff]
        %v227 = vld [vmem:[%s168 + $0xb8] sm:$0xff]
        %v228 = vld [vmem:[%s168 + $0xc0] sm:$0xff]
        %v229 = vld [vmem:[%s168 + $0xc8] sm:$0xff]
        %v230 = vld [vmem:[%s168 + $0xd0] sm:$0xff]
        %v231 = vld [vmem:[%s168 + $0xd8] sm:$0xff]
        %v232 = vld [vmem:[%s168 + $0xe0] sm:$0xff]
        %v233 = vld [vmem:[%s168 + $0xe8] sm:$0xff]
        %v234 = vld [vmem:[%s168 + $0xf0] sm:$0xff]
        %v235 = vld [vmem:[%s168 + $0xf8] sm:$0xff]
        %v236 = vstv %s203
        %v237 = vmul.f32 %v236, %v204
        %v238 = vmul.f32 %v236, %v205
        %v239 = vmul.f32 %v236, %v206
        %v240 = vmul.f32 %v236, %v207
        %v241 = vmul.f32 %v236, %v208
        %v242 = vmul.f32 %v236, %v209
        %v243 = vmul.f32 %v236, %v210
        %v244 = vmul.f32 %v236, %v211
        %v245 = vmul.f32 %v236, %v212
        %v246 = vmul.f32 %v236, %v213
        %v247 = vmul.f32 %v236, %v214
        %v248 = vmul.f32 %v236, %v215
        %v249 = vmul.f32 %v236, %v216
        %v250 = vmul.f32 %v236, %v217
        %v251 = vmul.f32 %v236, %v218
        %v252 = vmul.f32 %v236, %v219
        %v253 = vmul.f32 %v236, %v220
        %v254 = vmul.f32 %v236, %v221
        %v255 = vmul.f32 %v236, %v222
        %v256 = vmul.f32 %v236, %v223
        %v257 = vmul.f32 %v236, %v224
        %v258 = vmul.f32 %v236, %v225
        %v259 = vmul.f32 %v236, %v226
        %v260 = vmul.f32 %v236, %v227
        %v261 = vmul.f32 %v236, %v228
        %v262 = vmul.f32 %v236, %v229
        %v263 = vmul.f32 %v236, %v230
        %v264 = vmul.f32 %v236, %v231
        %v265 = vmul.f32 %v236, %v232
        %v266 = vmul.f32 %v236, %v233
        %v267 = vmul.f32 %v236, %v234
        %v268 = vmul.f32 %v236, %v235
        %269 = vst [vmem:[%s188] sm:$0xff] %v237
        %270 = vst [vmem:[%s188 + $0x8] sm:$0xff] %v238
        %271 = vst [vmem:[%s188 + $0x10] sm:$0xff] %v239
        %272 = vst [vmem:[%s188 + $0x18] sm:$0xff] %v240
        %273 = vst [vmem:[%s188 + $0x20] sm:$0xff] %v241
        %274 = vst [vmem:[%s188 + $0x28] sm:$0xff] %v242
        %275 = vst [vmem:[%s188 + $0x30] sm:$0xff] %v243
        %276 = vst [vmem:[%s188 + $0x38] sm:$0xff] %v244
        %277 = vst [vmem:[%s188 + $0x40] sm:$0xff] %v245
        %278 = vst [vmem:[%s188 + $0x48] sm:$0xff] %v246
        %279 = vst [vmem:[%s188 + $0x50] sm:$0xff] %v247
        %280 = vst [vmem:[%s188 + $0x58] sm:$0xff] %v248
        %281 = vst [vmem:[%s188 + $0x60] sm:$0xff] %v249
        %282 = vst [vmem:[%s188 + $0x68] sm:$0xff] %v250
        %283 = vst [vmem:[%s188 + $0x70] sm:$0xff] %v251
        %284 = vst [vmem:[%s188 + $0x78] sm:$0xff] %v252
        %285 = vst [vmem:[%s188 + $0x80] sm:$0xff] %v253
        %286 = vst [vmem:[%s188 + $0x88] sm:$0xff] %v254
        %287 = vst [vmem:[%s188 + $0x90] sm:$0xff] %v255
        %288 = vst [vmem:[%s188 + $0x98] sm:$0xff] %v256
        %289 = vst [vmem:[%s188 + $0xa0] sm:$0xff] %v257
        %290 = vst [vmem:[%s188 + $0xa8] sm:$0xff] %v258
        %291 = vst [vmem:[%s188 + $0xb0] sm:$0xff] %v259
        %292 = vst [vmem:[%s188 + $0xb8] sm:$0xff] %v260
        %293 = vst [vmem:[%s188 + $0xc0] sm:$0xff] %v261
        %294 = vst [vmem:[%s188 + $0xc8] sm:$0xff] %v262
        %295 = vst [vmem:[%s188 + $0xd0] sm:$0xff] %v263
        %296 = vst [vmem:[%s188 + $0xd8] sm:$0xff] %v264
        %297 = vst [vmem:[%s188 + $0xe0] sm:$0xff] %v265
        %298 = vst [vmem:[%s188 + $0xe8] sm:$0xff] %v266
        %299 = vst [vmem:[%s188 + $0xf0] sm:$0xff] %v267
        %300 = vst [vmem:[%s188 + $0xf8] sm:$0xff] %v268
        %s301 = sand.u32 %s91, 1
        %s302 = scalar_lea.sflag [#allocation5], %s301
        %s303 = sand.u32 %s91, 1
        %s304 = smul.addr %s303, 256
        %s305 = scalar_lea.vmem [#allocation6], %s304
        // Predicated region
        $region33: #{tpu_custom_call.1} parent=27 // pred_check
          %p306 = pneg %p101
        $region34: #{tpu_custom_call.1} parent=27 // pred_check_branch
          %308 = sbr.rel (%p306) target = $region36
        $region35: #{tpu_custom_call.1} parent=27 // pred_region
          %s309 = smul.u32 2, %s24
          %s310 = smul.u32 16, %s25
          %s311 = ssub.s32 3, %s309
          %p312 = scmp.lt.s32.totalorder %s311, 2
          %s313 = scalar_select %p312, %s311, 2
          %s314 = smul.u32 128, %s313
          %s315 = smul.u32 %s314, 16
          %s317 = ssub.s32 4096, %s315
          %318 = vsyncadd %s302, %s317
          %p319 = scmp.ne.s32.totalorder 0, %s315
          %s320 = smul.addr %s309, 16
          %s321 = sadd.s32 %s310, %s320
          %s322 = smul.addr %s321, 128
          %s323 = scalar_lea.hbm %s2, %s322
          %s324 = smul.u32 128, %s313
          %s325 = sshll.u32 %s305, 4
          %s326 = int_to_ptr.vmem [resolvable:$true] %s325
          %s327 = sshll.u32 %s324, 4
          %331 = dma.vmem_to_hbm [thread:$0]  (%p319), %s326, %s327, %s323, %s302, 2048, 2048, 128
        $region36: #{tpu_custom_call.1} parent=27 // pred_fallthru
          _
      $region28: #{tpu_custom_call.1} parent=5 // pred_fallthru
        _
      %p332 = scmp.le.s32.totalorder 2, %s15
      // Predicated region
      $region37: #{tpu_custom_call.1} parent=5 // pred_check
        %p333 = pneg %p332
      $region38: #{tpu_custom_call.1} parent=5 // pred_check_branch
        %335 = sbr.rel (%p333) target = $region40
      $region39: #{tpu_custom_call.1} parent=5 // pred_region
        %s336 = ssub.s32 %s15, 2
        // Predicated region
        $region41: #{tpu_custom_call.1} parent=39 // pred_check
          %p337 = pneg %p107
        $region42: #{tpu_custom_call.1} parent=39 // pred_check_branch
          %339 = sbr.rel (%p337) target = $region44
        $region43: #{tpu_custom_call.1} parent=39 // pred_region
          %s340 = sand.u32 %s92, 1
          %s341 = scalar_lea.sflag [#allocation5], %s340
          %s342 = sand.u32 %s92, 1
          %s343 = smul.addr %s342, 256
          %s344 = scalar_lea.vmem [#allocation6], %s343
          %345 = dma.done %s341, 4096
        $region44: #{tpu_custom_call.1} parent=39 // pred_fallthru
          _
      $region40: #{tpu_custom_call.1} parent=5 // pred_fallthru
        _
    $region6: #{tpu_custom_call.1} parent=1 // loop_footer
      %s19 = sadd.s32 1, %s15
    $region7: #{tpu_custom_call.1} parent=1 // loop_footer_branch
      %14 = sbr.rel target = $region3
    $region8: #{tpu_custom_call.1} parent=1 // loop_exit
      _
    %346 = vsyncpa [#allocation4], 1
    %s347 = scalar_lea.sflag [#allocation4], 1
    %348 = vsyncpa %s347, 1
    %349 = vsyncpa [#allocation5], 1
    %s350 = scalar_lea.sflag [#allocation5], 1
    %351 = vsyncpa %s350, 1

</llo_original>
